<compile_context>
chip_gen: v7x
topology: tpu7x:2x2x1
jax: 0.10.0
libtpu: 0.0.40
codegen_flags: <defaults>
</compile_context>

<pallas_src>
import jax
import jax.numpy as jnp
from jax.experimental import pallas as pl
from jax.experimental.pallas import tpu as pltpu


def _fused_q4_eora_kernel(xperm_ref, qw_ref, side_ref, y_ref, nib_ref):
    """Computes one (1, TN) output tile.

    xperm_ref: (8, Kp) bf16 resident activations, xperm[s, r] = x[8*r + s]
    qw_ref:    (Kp, TN) int32 packed 4-bit weights (streamed tile)
    side_ref:  (2, TN) f32, row 0 = scales, row 1 = bias_eff (streamed tile)
    y_ref:     (1, TN) f32 output tile
    nib_ref:   (Kp, TN) bf16 VMEM scratch, reused for every nibble
    """
    acc = jnp.zeros(y_ref.shape, jnp.float32)
    # Static unroll over the 8 nibbles; every iteration overwrites nib_ref so
    # at most one dequantized (Kp, TN) slab is live at any time.
    for s in range(8):
        qw = qw_ref[...]                                   # pure VMEM load
        shifted = qw if s == 0 else (qw >> (4 * s))        # skip shift on s=0
        # TODO(synk): a uint32 logical shift would let s==7 drop the `& 0xF`;
        # signed shift + mask kept because its Mosaic lowering is guaranteed.
        nib_ref[...] = (shifted & 0xF).astype(jnp.bfloat16)  # exact in bf16
        acc = acc + jnp.dot(xperm_ref[s:s + 1, :], nib_ref[...],
                            preferred_element_type=jnp.float32)
    # W_deq = scales*q - zeros  =>  y = scales*acc + (bias - zeros*sum(x) + lora)
    y_ref[...] = (side_ref[0:1, :] * acc + side_ref[1:2, :]).astype(y_ref.dtype)


def _pick_tile_n(n, min_steps=8):
    """Largest lane-dense N tile that still yields >= min_steps grid steps.

    min_steps=8 keeps both v7x TensorCores fed; on single-TC v5e/v6e pass
    min_steps=1 to prefer the biggest (2048) tile and amortize per-step
    pipeline overhead.  `n` must already be a multiple of 128 (wrapper pads).
    """
    divisors = [t for t in (2048, 1024, 512, 256, 128) if n % t == 0]
    if not divisors:
        return n
    for t in divisors:
        if n // t >= min_steps:
            return t
    return divisors[0]     # small N: largest divisor, few steps unavoidable


def quant4linear_fused_eora(x, qweight, scales, zeros, bias, down, up,
                            *, min_grid_steps=8):
    """x: (..., infeatures) single token; returns (..., outfeatures) in x.dtype."""
    if x.size != x.shape[-1]:
        # TODO(synk): batched decode (M>1) would reuse the same weight stream;
        # kept single-token to match the original module's forward contract.
        raise ValueError('Only supports a single token currently.')
    orig_dtype = x.dtype
    orig_shape = x.shape
    infeatures = orig_shape[-1]
    outfeatures = bias.shape[0]
    Kp = qweight.shape[0]
    Kq = Kp * 8                     # input features covered by the packed qweight
    rank = up.shape[0]

    x2 = x.reshape(1, infeatures).astype(jnp.float32)
    # Glue: row s, col r of xperm equals x[8*r + s] (nibble s, packed row r).
    # Pre-cast to bf16 once (no per-nibble casts inside the kernel).
    xperm = x2[:, :Kq].reshape(Kp, 8).T.astype(jnp.bfloat16)         # (8, Kp)
    x_sum = jnp.sum(x2[:, :Kq])                                      # scalar f32

    # LoRA path, hoisted once (mirrors torch.matmul(xh, self.down, out=down_proj)
    # followed by the fused dp @ up inside vecquant4matmul_lora).
    # TODO(synk): torch.half (fp16) is emulated with bfloat16 (TPU-native).
    dp = jnp.dot(x2.astype(jnp.bfloat16), down.astype(jnp.bfloat16),
                 preferred_element_type=jnp.float32).astype(jnp.bfloat16)   # (1, R)
    lora_full = jnp.dot(dp, up.astype(jnp.bfloat16),
                        preferred_element_type=jnp.float32)                 # (1, N)

    # Fold every input-independent per-column term into one effective bias row.
    scales_row = scales.reshape(1, outfeatures).astype(jnp.float32)
    zeros_row = zeros.reshape(1, outfeatures).astype(jnp.float32)
    bias_eff = (bias.reshape(1, outfeatures).astype(jnp.float32)
                - zeros_row * x_sum + lora_full)
    side = jnp.concatenate([scales_row, bias_eff], axis=0)           # (2, N) f32

    # Pad N to a multiple of 128 so every tile/store is lane-dense & unmasked.
    Npad = ((outfeatures + 127) // 128) * 128
    qw = qweight
    if Npad != outfeatures:
        qw = jnp.pad(qw, ((0, 0), (0, Npad - outfeatures)))
        side = jnp.pad(side, ((0, 0), (0, Npad - outfeatures)))

    TN = _pick_tile_n(Npad, min_grid_steps)
    grid = (Npad // TN,)

    # VMEM budget: streamed double-buffered tiles + one bf16 nibble slab + residents.
    est = (2 * Kp * TN * 4          # qweight tiles, double-buffered (int32)
           + Kp * TN * 2            # nibble slab scratch (bf16)
           + 2 * 2 * TN * 4         # side tiles (scales, bias_eff)
           + 2 * 1 * TN * 4         # output tile
           + 2 * 8 * Kp * 2)        # resident xperm (bf16)
    vmem_limit = int(min(max(2 * est, 1 * 1024 * 1024), 48 * 1024 * 1024))

    y = pl.pallas_call(
        _fused_q4_eora_kernel,
        out_shape=jax.ShapeDtypeStruct((1, Npad), jnp.float32),
        grid_spec=pltpu.PrefetchScalarGridSpec(
            num_scalar_prefetch=0,
            grid=grid,
            in_specs=[
                pl.BlockSpec((8, Kp), lambda j: (0, 0)),      # xperm (resident)
                pl.BlockSpec((Kp, TN), lambda j: (0, j)),     # qweight tile (streamed)
                pl.BlockSpec((2, TN), lambda j: (0, j)),      # scales + bias_eff tile
            ],
            out_specs=pl.BlockSpec((1, TN), lambda j: (0, j)),
            scratch_shapes=[pltpu.VMEM((Kp, TN), jnp.bfloat16)],   # nibble slab
        ),
        compiler_params=pltpu.CompilerParams(
            dimension_semantics=("parallel",),
            vmem_limit_bytes=vmem_limit,
        ),
    )(xperm, qw, side)

    y = y[:, :outfeatures]
    outshape = orig_shape[:-1] + (outfeatures,)
    return y.astype(orig_dtype).reshape(outshape)


def reference_forward(x, qweight, scales, zeros, bias, down, up):
    """Pure-JAX reference with the direct (unfolded) dequant formulation."""
    Kp, N = qweight.shape
    Kq = Kp * 8
    x2 = x.reshape(1, -1).astype(jnp.float32)
    nib = [((qweight >> (4 * s)) & 0xF).astype(jnp.float32) for s in range(8)]
    wq = jnp.stack(nib, axis=1).reshape(Kq, N)              # unpacked, row 8*r + s
    w = scales.reshape(1, N) * wq - zeros.reshape(1, N)     # dequantized weight
    quant = x2[:, :Kq] @ w
    dp = jnp.dot(x2.astype(jnp.bfloat16), down.astype(jnp.bfloat16),
                 preferred_element_type=jnp.float32).astype(jnp.bfloat16)
    lora = jnp.dot(dp, up.astype(jnp.bfloat16), preferred_element_type=jnp.float32)
    y = bias.reshape(1, N) + quant + lora
    return y.astype(x.dtype).reshape(x.shape[:-1] + (N,))


if __name__ == "__main__":
    infeatures, outfeatures, rank = 256, 128, 64
    Kp = infeatures // 32 * 3          # exactly the dummy module's qweight row count

    key = jax.random.PRNGKey(0)
    ks = jax.random.split(key, 7)

    # Single token input (x.shape[-1] == x.size).
    x = jax.random.normal(ks[0], (1, infeatures), dtype=jnp.float32)

    # Deterministic synthetic "buffers" (module __init__ shapes; zeros would be trivial).
    qbits = jax.random.bits(ks[1], (Kp, outfeatures), dtype=jnp.uint32)
    qweight = jax.lax.bitcast_convert_type(qbits, jnp.int32)                  # int32 packed 4-bit
    scales = jax.random.uniform(ks[2], (outfeatures, 1), jnp.float32, 0.005, 0.02)
    zeros = scales * jax.random.randint(ks[3], (outfeatures, 1), 0, 16).astype(jnp.float32)
    bias = 0.1 * jax.random.normal(ks[4], (outfeatures,), dtype=jnp.float32)
    down = (0.02 * jax.random.normal(ks[5], (infeatures, rank))).astype(jnp.bfloat16)
    up = (0.02 * jax.random.normal(ks[6], (rank, outfeatures))).astype(jnp.bfloat16)

    y = quant4linear_fused_eora(x, qweight, scales, zeros, bias, down, up)
    jax.block_until_ready(y)

    y_ref = reference_forward(x, qweight, scales, zeros, bias, down, up)
    assert y.shape == (1, outfeatures) and y.dtype == x.dtype
    assert jnp.allclose(y, y_ref, rtol=2e-2, atol=2e-2), (
        f"mismatch: max abs diff = {float(jnp.max(jnp.abs(y - y_ref)))}")

    print("KERNEL_OK")
</pallas_src>

<mosaic_0001>
module attributes {stable_mosaic.version = 11 : i64} {
  func.func @_fused_q4_eora_kernel(%arg0: i32, %arg1: memref<8x24xbf16, #tpu.memory_space<vmem>>, %arg2: memref<24x128xi32, #tpu.memory_space<vmem>>, %arg3: memref<2x128xf32, #tpu.memory_space<vmem>>, %arg4: memref<1x128xf32, #tpu.memory_space<vmem>>, %arg5: memref<24x128xbf16, #tpu.memory_space<vmem>>) attributes {dimension_semantics = [#tpu.dimension_semantics<parallel>], iteration_bounds = array<i64: 1>, scalar_prefetch = 0 : i64, scratch_operands = 1 : i64, tpu.core_type = #tpu.core_type<tc>, window_params = [{pipeline_mode = #tpu.pipeline_mode<synchronous>, transform_indices = @transform_0, window_bounds = array<i64: 8, 24>}, {transform_indices = @transform_1, window_bounds = array<i64: 24, 128>}, {transform_indices = @transform_2, window_bounds = array<i64: 2, 128>}, {transform_indices = @transform_3, window_bounds = array<i64: 1, 128>}]} {
    %cst = arith.constant 0.000000e+00 : f32
    %0 = vector.broadcast %cst : f32 to vector<1x128xf32>
    %c0 = arith.constant 0 : index
    %c0_0 = arith.constant 0 : index
    %1 = vector.load %arg2[%c0, %c0_0] : memref<24x128xi32, #tpu.memory_space<vmem>>, vector<24x128xi32>
    %c15_i32 = arith.constant 15 : i32
    %2 = vector.broadcast %c15_i32 : i32 to vector<24x128xi32>
    %3 = arith.andi %1, %2 : vector<24x128xi32>
    %4 = arith.sitofp %3 : vector<24x128xi32> to vector<24x128xbf16>
    %c0_1 = arith.constant 0 : index
    %c0_2 = arith.constant 0 : index
    %5 = vector.load %arg5[%c0_1, %c0_2] : memref<24x128xbf16, #tpu.memory_space<vmem>>, vector<24x128xbf16>
    tpu.vector_store %arg5[%c0_1, %c0_2], %4 {strides = array<i32>} : memref<24x128xbf16, #tpu.memory_space<vmem>>, vector<24x128xbf16>,
    %c0_3 = arith.constant 0 : index
    %c0_4 = arith.constant 0 : index
    %6 = vector.load %arg1[%c0_3, %c0_4] : memref<8x24xbf16, #tpu.memory_space<vmem>>, vector<1x24xbf16>
    %c0_5 = arith.constant 0 : index
    %c0_6 = arith.constant 0 : index
    %7 = vector.load %arg5[%c0_5, %c0_6] : memref<24x128xbf16, #tpu.memory_space<vmem>>, vector<24x128xbf16>
    %cst_7 = arith.constant dense<0.000000e+00> : vector<1x128xf32>
    %8 = tpu.matmul %6, %7, %cst_7 {dimension_numbers = #tpu.dot_dimension_numbers<[1], [0], [0], [1], [0, 0, 1, 1], [], []>} : vector<1x24xbf16>, vector<24x128xbf16>, vector<1x128xf32> -> vector<1x128xf32>
    %9 = arith.addf %0, %8 : vector<1x128xf32>
    %c0_8 = arith.constant 0 : index
    %c0_9 = arith.constant 0 : index
    %10 = vector.load %arg2[%c0_8, %c0_9] : memref<24x128xi32, #tpu.memory_space<vmem>>, vector<24x128xi32>
    %c4_i32 = arith.constant 4 : i32
    %11 = vector.broadcast %c4_i32 : i32 to vector<24x128xi32>
    %12 = arith.shrsi %10, %11 : vector<24x128xi32>
    %c15_i32_10 = arith.constant 15 : i32
    %13 = vector.broadcast %c15_i32_10 : i32 to vector<24x128xi32>
    %14 = arith.andi %12, %13 : vector<24x128xi32>
    %15 = arith.sitofp %14 : vector<24x128xi32> to vector<24x128xbf16>
    %c0_11 = arith.constant 0 : index
    %c0_12 = arith.constant 0 : index
    %16 = vector.load %arg5[%c0_11, %c0_12] : memref<24x128xbf16, #tpu.memory_space<vmem>>, vector<24x128xbf16>
    tpu.vector_store %arg5[%c0_11, %c0_12], %15 {strides = array<i32>} : memref<24x128xbf16, #tpu.memory_space<vmem>>, vector<24x128xbf16>,
    %c1 = arith.constant 1 : index
    %c0_13 = arith.constant 0 : index
    %17 = vector.load %arg1[%c1, %c0_13] : memref<8x24xbf16, #tpu.memory_space<vmem>>, vector<1x24xbf16>
    %c0_14 = arith.constant 0 : index
    %c0_15 = arith.constant 0 : index
    %18 = vector.load %arg5[%c0_14, %c0_15] : memref<24x128xbf16, #tpu.memory_space<vmem>>, vector<24x128xbf16>
    %cst_16 = arith.constant dense<0.000000e+00> : vector<1x128xf32>
    %19 = tpu.matmul %17, %18, %cst_16 {dimension_numbers = #tpu.dot_dimension_numbers<[1], [0], [0], [1], [0, 0, 1, 1], [], []>} : vector<1x24xbf16>, vector<24x128xbf16>, vector<1x128xf32> -> vector<1x128xf32>
    %20 = arith.addf %9, %19 : vector<1x128xf32>
    %c0_17 = arith.constant 0 : index
    %c0_18 = arith.constant 0 : index
    %21 = vector.load %arg2[%c0_17, %c0_18] : memref<24x128xi32, #tpu.memory_space<vmem>>, vector<24x128xi32>
    %c8_i32 = arith.constant 8 : i32
    %22 = vector.broadcast %c8_i32 : i32 to vector<24x128xi32>
    %23 = arith.shrsi %21, %22 : vector<24x128xi32>
    %c15_i32_19 = arith.constant 15 : i32
    %24 = vector.broadcast %c15_i32_19 : i32 to vector<24x128xi32>
    %25 = arith.andi %23, %24 : vector<24x128xi32>
    %26 = arith.sitofp %25 : vector<24x128xi32> to vector<24x128xbf16>
    %c0_20 = arith.constant 0 : index
    %c0_21 = arith.constant 0 : index
    %27 = vector.load %arg5[%c0_20, %c0_21] : memref<24x128xbf16, #tpu.memory_space<vmem>>, vector<24x128xbf16>
    tpu.vector_store %arg5[%c0_20, %c0_21], %26 {strides = array<i32>} : memref<24x128xbf16, #tpu.memory_space<vmem>>, vector<24x128xbf16>,
    %c2 = arith.constant 2 : index
    %c0_22 = arith.constant 0 : index
    %28 = vector.load %arg1[%c2, %c0_22] : memref<8x24xbf16, #tpu.memory_space<vmem>>, vector<1x24xbf16>
    %c0_23 = arith.constant 0 : index
    %c0_24 = arith.constant 0 : index
    %29 = vector.load %arg5[%c0_23, %c0_24] : memref<24x128xbf16, #tpu.memory_space<vmem>>, vector<24x128xbf16>
    %cst_25 = arith.constant dense<0.000000e+00> : vector<1x128xf32>
    %30 = tpu.matmul %28, %29, %cst_25 {dimension_numbers = #tpu.dot_dimension_numbers<[1], [0], [0], [1], [0, 0, 1, 1], [], []>} : vector<1x24xbf16>, vector<24x128xbf16>, vector<1x128xf32> -> vector<1x128xf32>
    %31 = arith.addf %20, %30 : vector<1x128xf32>
    %c0_26 = arith.constant 0 : index
    %c0_27 = arith.constant 0 : index
    %32 = vector.load %arg2[%c0_26, %c0_27] : memref<24x128xi32, #tpu.memory_space<vmem>>, vector<24x128xi32>
    %c12_i32 = arith.constant 12 : i32
    %33 = vector.broadcast %c12_i32 : i32 to vector<24x128xi32>
    %34 = arith.shrsi %32, %33 : vector<24x128xi32>
    %c15_i32_28 = arith.constant 15 : i32
    %35 = vector.broadcast %c15_i32_28 : i32 to vector<24x128xi32>
    %36 = arith.andi %34, %35 : vector<24x128xi32>
    %37 = arith.sitofp %36 : vector<24x128xi32> to vector<24x128xbf16>
    %c0_29 = arith.constant 0 : index
    %c0_30 = arith.constant 0 : index
    %38 = vector.load %arg5[%c0_29, %c0_30] : memref<24x128xbf16, #tpu.memory_space<vmem>>, vector<24x128xbf16>
    tpu.vector_store %arg5[%c0_29, %c0_30], %37 {strides = array<i32>} : memref<24x128xbf16, #tpu.memory_space<vmem>>, vector<24x128xbf16>,
    %c3 = arith.constant 3 : index
    %c0_31 = arith.constant 0 : index
    %39 = vector.load %arg1[%c3, %c0_31] : memref<8x24xbf16, #tpu.memory_space<vmem>>, vector<1x24xbf16>
    %c0_32 = arith.constant 0 : index
    %c0_33 = arith.constant 0 : index
    %40 = vector.load %arg5[%c0_32, %c0_33] : memref<24x128xbf16, #tpu.memory_space<vmem>>, vector<24x128xbf16>
    %cst_34 = arith.constant dense<0.000000e+00> : vector<1x128xf32>
    %41 = tpu.matmul %39, %40, %cst_34 {dimension_numbers = #tpu.dot_dimension_numbers<[1], [0], [0], [1], [0, 0, 1, 1], [], []>} : vector<1x24xbf16>, vector<24x128xbf16>, vector<1x128xf32> -> vector<1x128xf32>
    %42 = arith.addf %31, %41 : vector<1x128xf32>
    %c0_35 = arith.constant 0 : index
    %c0_36 = arith.constant 0 : index
    %43 = vector.load %arg2[%c0_35, %c0_36] : memref<24x128xi32, #tpu.memory_space<vmem>>, vector<24x128xi32>
    %c16_i32 = arith.constant 16 : i32
    %44 = vector.broadcast %c16_i32 : i32 to vector<24x128xi32>
    %45 = arith.shrsi %43, %44 : vector<24x128xi32>
    %c15_i32_37 = arith.constant 15 : i32
    %46 = vector.broadcast %c15_i32_37 : i32 to vector<24x128xi32>
    %47 = arith.andi %45, %46 : vector<24x128xi32>
    %48 = arith.sitofp %47 : vector<24x128xi32> to vector<24x128xbf16>
    %c0_38 = arith.constant 0 : index
    %c0_39 = arith.constant 0 : index
    %49 = vector.load %arg5[%c0_38, %c0_39] : memref<24x128xbf16, #tpu.memory_space<vmem>>, vector<24x128xbf16>
    tpu.vector_store %arg5[%c0_38, %c0_39], %48 {strides = array<i32>} : memref<24x128xbf16, #tpu.memory_space<vmem>>, vector<24x128xbf16>,
    %c4 = arith.constant 4 : index
    %c0_40 = arith.constant 0 : index
    %50 = vector.load %arg1[%c4, %c0_40] : memref<8x24xbf16, #tpu.memory_space<vmem>>, vector<1x24xbf16>
    %c0_41 = arith.constant 0 : index
    %c0_42 = arith.constant 0 : index
    %51 = vector.load %arg5[%c0_41, %c0_42] : memref<24x128xbf16, #tpu.memory_space<vmem>>, vector<24x128xbf16>
    %cst_43 = arith.constant dense<0.000000e+00> : vector<1x128xf32>
    %52 = tpu.matmul %50, %51, %cst_43 {dimension_numbers = #tpu.dot_dimension_numbers<[1], [0], [0], [1], [0, 0, 1, 1], [], []>} : vector<1x24xbf16>, vector<24x128xbf16>, vector<1x128xf32> -> vector<1x128xf32>
    %53 = arith.addf %42, %52 : vector<1x128xf32>
    %c0_44 = arith.constant 0 : index
    %c0_45 = arith.constant 0 : index
    %54 = vector.load %arg2[%c0_44, %c0_45] : memref<24x128xi32, #tpu.memory_space<vmem>>, vector<24x128xi32>
    %c20_i32 = arith.constant 20 : i32
    %55 = vector.broadcast %c20_i32 : i32 to vector<24x128xi32>
    %56 = arith.shrsi %54, %55 : vector<24x128xi32>
    %c15_i32_46 = arith.constant 15 : i32
    %57 = vector.broadcast %c15_i32_46 : i32 to vector<24x128xi32>
    %58 = arith.andi %56, %57 : vector<24x128xi32>
    %59 = arith.sitofp %58 : vector<24x128xi32> to vector<24x128xbf16>
    %c0_47 = arith.constant 0 : index
    %c0_48 = arith.constant 0 : index
    %60 = vector.load %arg5[%c0_47, %c0_48] : memref<24x128xbf16, #tpu.memory_space<vmem>>, vector<24x128xbf16>
    tpu.vector_store %arg5[%c0_47, %c0_48], %59 {strides = array<i32>} : memref<24x128xbf16, #tpu.memory_space<vmem>>, vector<24x128xbf16>,
    %c5 = arith.constant 5 : index
    %c0_49 = arith.constant 0 : index
    %61 = vector.load %arg1[%c5, %c0_49] : memref<8x24xbf16, #tpu.memory_space<vmem>>, vector<1x24xbf16>
    %c0_50 = arith.constant 0 : index
    %c0_51 = arith.constant 0 : index
    %62 = vector.load %arg5[%c0_50, %c0_51] : memref<24x128xbf16, #tpu.memory_space<vmem>>, vector<24x128xbf16>
    %cst_52 = arith.constant dense<0.000000e+00> : vector<1x128xf32>
    %63 = tpu.matmul %61, %62, %cst_52 {dimension_numbers = #tpu.dot_dimension_numbers<[1], [0], [0], [1], [0, 0, 1, 1], [], []>} : vector<1x24xbf16>, vector<24x128xbf16>, vector<1x128xf32> -> vector<1x128xf32>
    %64 = arith.addf %53, %63 : vector<1x128xf32>
    %c0_53 = arith.constant 0 : index
    %c0_54 = arith.constant 0 : index
    %65 = vector.load %arg2[%c0_53, %c0_54] : memref<24x128xi32, #tpu.memory_space<vmem>>, vector<24x128xi32>
    %c24_i32 = arith.constant 24 : i32
    %66 = vector.broadcast %c24_i32 : i32 to vector<24x128xi32>
    %67 = arith.shrsi %65, %66 : vector<24x128xi32>
    %c15_i32_55 = arith.constant 15 : i32
    %68 = vector.broadcast %c15_i32_55 : i32 to vector<24x128xi32>
    %69 = arith.andi %67, %68 : vector<24x128xi32>
    %70 = arith.sitofp %69 : vector<24x128xi32> to vector<24x128xbf16>
    %c0_56 = arith.constant 0 : index
    %c0_57 = arith.constant 0 : index
    %71 = vector.load %arg5[%c0_56, %c0_57] : memref<24x128xbf16, #tpu.memory_space<vmem>>, vector<24x128xbf16>
    tpu.vector_store %arg5[%c0_56, %c0_57], %70 {strides = array<i32>} : memref<24x128xbf16, #tpu.memory_space<vmem>>, vector<24x128xbf16>,
    %c6 = arith.constant 6 : index
    %c0_58 = arith.constant 0 : index
    %72 = vector.load %arg1[%c6, %c0_58] : memref<8x24xbf16, #tpu.memory_space<vmem>>, vector<1x24xbf16>
    %c0_59 = arith.constant 0 : index
    %c0_60 = arith.constant 0 : index
    %73 = vector.load %arg5[%c0_59, %c0_60] : memref<24x128xbf16, #tpu.memory_space<vmem>>, vector<24x128xbf16>
    %cst_61 = arith.constant dense<0.000000e+00> : vector<1x128xf32>
    %74 = tpu.matmul %72, %73, %cst_61 {dimension_numbers = #tpu.dot_dimension_numbers<[1], [0], [0], [1], [0, 0, 1, 1], [], []>} : vector<1x24xbf16>, vector<24x128xbf16>, vector<1x128xf32> -> vector<1x128xf32>
    %75 = arith.addf %64, %74 : vector<1x128xf32>
    %c0_62 = arith.constant 0 : index
    %c0_63 = arith.constant 0 : index
    %76 = vector.load %arg2[%c0_62, %c0_63] : memref<24x128xi32, #tpu.memory_space<vmem>>, vector<24x128xi32>
    %c28_i32 = arith.constant 28 : i32
    %77 = vector.broadcast %c28_i32 : i32 to vector<24x128xi32>
    %78 = arith.shrsi %76, %77 : vector<24x128xi32>
    %c15_i32_64 = arith.constant 15 : i32
    %79 = vector.broadcast %c15_i32_64 : i32 to vector<24x128xi32>
    %80 = arith.andi %78, %79 : vector<24x128xi32>
    %81 = arith.sitofp %80 : vector<24x128xi32> to vector<24x128xbf16>
    %c0_65 = arith.constant 0 : index
    %c0_66 = arith.constant 0 : index
    %82 = vector.load %arg5[%c0_65, %c0_66] : memref<24x128xbf16, #tpu.memory_space<vmem>>, vector<24x128xbf16>
    tpu.vector_store %arg5[%c0_65, %c0_66], %81 {strides = array<i32>} : memref<24x128xbf16, #tpu.memory_space<vmem>>, vector<24x128xbf16>,
    %c7 = arith.constant 7 : index
    %c0_67 = arith.constant 0 : index
    %83 = vector.load %arg1[%c7, %c0_67] : memref<8x24xbf16, #tpu.memory_space<vmem>>, vector<1x24xbf16>
    %c0_68 = arith.constant 0 : index
    %c0_69 = arith.constant 0 : index
    %84 = vector.load %arg5[%c0_68, %c0_69] : memref<24x128xbf16, #tpu.memory_space<vmem>>, vector<24x128xbf16>
    %cst_70 = arith.constant dense<0.000000e+00> : vector<1x128xf32>
    %85 = tpu.matmul %83, %84, %cst_70 {dimension_numbers = #tpu.dot_dimension_numbers<[1], [0], [0], [1], [0, 0, 1, 1], [], []>} : vector<1x24xbf16>, vector<24x128xbf16>, vector<1x128xf32> -> vector<1x128xf32>
    %86 = arith.addf %75, %85 : vector<1x128xf32>
    %c0_71 = arith.constant 0 : index
    %c0_72 = arith.constant 0 : index
    %87 = vector.load %arg3[%c0_71, %c0_72] : memref<2x128xf32, #tpu.memory_space<vmem>>, vector<1x128xf32>
    %88 = arith.mulf %87, %86 : vector<1x128xf32>
    %c1_73 = arith.constant 1 : index
    %c0_74 = arith.constant 0 : index
    %89 = vector.load %arg3[%c1_73, %c0_74] : memref<2x128xf32, #tpu.memory_space<vmem>>, vector<1x128xf32>
    %90 = arith.addf %88, %89 : vector<1x128xf32>
    %c0_75 = arith.constant 0 : index
    %c0_76 = arith.constant 0 : index
    %91 = vector.load %arg4[%c0_75, %c0_76] : memref<1x128xf32, #tpu.memory_space<vmem>>, vector<1x128xf32>
    tpu.vector_store %arg4[%c0_75, %c0_76], %90 {strides = array<i32>} : memref<1x128xf32, #tpu.memory_space<vmem>>, vector<1x128xf32>,
    return
  }
  func.func @transform_0(%arg0: i32) -> (i32, i32) {
    %c0_i32 = arith.constant 0 : i32
    %c0_i32_0 = arith.constant 0 : i32
    %c0_i32_1 = arith.constant 0 : i32
    return %c0_i32, %c0_i32_0 : i32, i32
  }
  func.func @transform_1(%arg0: i32) -> (i32, i32) {
    %c0_i32 = arith.constant 0 : i32
    %c0_i32_0 = arith.constant 0 : i32
    return %c0_i32, %arg0 : i32, i32
  }
  func.func @transform_2(%arg0: i32) -> (i32, i32) {
    %c0_i32 = arith.constant 0 : i32
    %c0_i32_0 = arith.constant 0 : i32
    return %c0_i32, %arg0 : i32, i32
  }
  func.func @transform_3(%arg0: i32) -> (i32, i32) {
    %c0_i32 = arith.constant 0 : i32
    %c0_i32_0 = arith.constant 0 : i32
    return %c0_i32, %arg0 : i32, i32
  }
}

</mosaic_0001>

<llo_original>
// kernel: tpu_custom_call.1
$region0: #{tpu_custom_call.1}
  #allocation0 [shape = 'u32[]', space=smem, size = 0x4, offset = 0x4, fixed_abs, tag = 'smem constant byte address 0x4 - core index']
  #allocation1 [shape = 'u32[144,128]{1,0:T(1,128)}', space=vmem, size = 0x12000, scoped, tag = 'internal scratch']
  #allocation2 [shape = 'bf16[24,128]{1,0:T(8,128)(2,1)}', space=vmem, size = 0x1800, scoped, tag = 'scratch operand']
  %s0 = inlined_call_operand.hbm [shape: bf16[8,24], index: 0, kind: input, shape index: {}]
  %s1 = inlined_call_operand.hbm [shape: s32[24,128], index: 1, kind: input, shape index: {}]
  %s2 = inlined_call_operand.vmem [shape: f32[2,128], index: 2, kind: input, shape index: {}]
  %s3 = inlined_call_operand.hbm [shape: f32[1,128], index: 3, kind: output, shape index: {}]
  %s4 = sld [smem:[#allocation0]]
  $region30: #{tpu_custom_call.1} parent=0
    _
  %s6 = ssub.s32 1, %s4
  %s7 = scalar_select 0, %s6, %s4
  $region1: #{tpu_custom_call.1} parent=0
    #allocation3 [shape = 'u8[2048]{0}', space=vmem, size = 0x800, scoped, tag = 'input window, operand 0, single buffered']
    #allocation4 [shape = 's32[1]{0}', space=sflag, size = 0x4, scoped, tag = 'scoped memory for tpu_custom_call.1']
    #allocation5 [shape = 's32[1]{0}', space=sflag, size = 0x4, scoped, tag = 'scoped memory for tpu_custom_call.1']
    #allocation6 [shape = 'u8[12288]{0}', space=vmem, size = 0x3000, scoped, tag = 'input window, operand 1, single buffered']
    #allocation7 [shape = 's32[1]{0}', space=sflag, size = 0x4, scoped, tag = 'scoped memory for tpu_custom_call.1']
    #allocation8 [shape = 'u8[512]{0}', space=vmem, size = 0x400, scoped, tag = 'output window, operand 0, single buffered']
    %8 = vsyncpa [#allocation4], 0
    %9 = vsyncpa [#allocation7], 0
    %10 = vsyncpa [#allocation5], 0
    // Predicated region
    $region2: #{tpu_custom_call.1} parent=1 // pred_check
      _
    $region3: #{tpu_custom_call.1} parent=1 // pred_check_branch
      %12 = sbr.rel (0) target = $region5
    $region4: #{tpu_custom_call.1} parent=1 // pred_region
      %s14 = ssub.s32 64, 64
      %15 = vsyncadd [#allocation4], %s14
      %s17 = sshll.u32 [#allocation3], 4
      %s18 = int_to_ptr.vmem [resolvable:$true] %s17
      %20 = dma.hbm_to_vmem [thread:$0]  %s0, 64, %s18, [#allocation4]
    $region5: #{tpu_custom_call.1} parent=1 // pred_fallthru
      _
    // Predicated region
    $region6: #{tpu_custom_call.1} parent=1 // pred_check
      _
    $region7: #{tpu_custom_call.1} parent=1 // pred_check_branch
      %22 = sbr.rel (0) target = $region9
    $region8: #{tpu_custom_call.1} parent=1 // pred_region
      %s24 = ssub.s32 384, 384
      %25 = vsyncadd [#allocation7], %s24
      %s26 = sshll.u32 [#allocation6], 4
      %s27 = int_to_ptr.vmem [resolvable:$true] %s26
      %32 = dma.hbm_to_vmem [thread:$0]  %s1, 384, %s27, [#allocation7], 128, 128, 8
    $region9: #{tpu_custom_call.1} parent=1 // pred_fallthru
      _
    // Predicated region
    $region10: #{tpu_custom_call.1} parent=1 // pred_check
      _
    $region11: #{tpu_custom_call.1} parent=1 // pred_check_branch
      %34 = sbr.rel (0) target = $region13
    $region12: #{tpu_custom_call.1} parent=1 // pred_region
      _
    $region13: #{tpu_custom_call.1} parent=1 // pred_fallthru
      _
    // Predicated region
    $region14: #{tpu_custom_call.1} parent=1 // pred_check
      _
    $region15: #{tpu_custom_call.1} parent=1 // pred_check_branch
      %36 = sbr.rel (0) target = $region17
    $region16: #{tpu_custom_call.1} parent=1 // pred_region
      %37 = dma.done [#allocation4], 64
    $region17: #{tpu_custom_call.1} parent=1 // pred_fallthru
      _
    // Predicated region
    $region18: #{tpu_custom_call.1} parent=1 // pred_check
      _
    $region19: #{tpu_custom_call.1} parent=1 // pred_check_branch
      %39 = sbr.rel (0) target = $region21
    $region20: #{tpu_custom_call.1} parent=1 // pred_region
      %40 = dma.done [#allocation7], 384
    $region21: #{tpu_custom_call.1} parent=1 // pred_fallthru
      _
    %v42 = vld [vmem:[#allocation6] sm:$0xff]
    %v43 = vld [vmem:[#allocation6 + $0x8] sm:$0xff]
    %v44 = vld [vmem:[#allocation6 + $0x10] sm:$0xff]
    %v45 = vand.u32 %v42, 15
    %v46 = vand.u32 %v43, 15
    %v47 = vand.u32 %v44, 15
    %v48 = vcvt.s32.f32 %v45
    %v49 = vcvt.s32.f32 %v46
    %v50 = vcvt.s32.f32 %v47
    %v51 = vpack.c.bf16 %v49, %v48
    %v52 = vpack.c.bf16 %v50, %v50
    %v55 = vunpack.c.l.b16 %v51
    %v56 = vunpack.c.h.b16 %v51
    %v57 = vunpack.c.l.b16 %v52
    %v58 = vpack.c.b16 %v55, %v55
    %v59 = vpack.c.b16 %v56, %v56
    %v60 = vpack.c.b16 %v57, %v57
    %64 = vst [vmem:[#allocation2] sm:$0xf] %v58
    %65 = vst [vmem:[#allocation2 + $0x4] sm:$0xf] %v59
    %66 = vst [vmem:[#allocation2 + $0x8] sm:$0xf] %v60
    %v67 = vld [vmem:[#allocation3] sm:$0x1]
    %v68 = vld [vmem:[#allocation2] sm:$0xf]
    %v69 = vld [vmem:[#allocation2 + $0x4] sm:$0xf]
    %v70 = vld [vmem:[#allocation2 + $0x8] sm:$0xf]
    %v71 = vld [vmem:[#allocation6] sm:$0xff]
    %v72 = vld [vmem:[#allocation6 + $0x8] sm:$0xff]
    %v73 = vld [vmem:[#allocation6 + $0x10] sm:$0xff]
    %v74 = vshra.s32 %v71, 4
    %v75 = vshra.s32 %v72, 4
    %v76 = vshra.s32 %v73, 4
    %v77 = vand.u32 %v74, 15
    %v78 = vand.u32 %v75, 15
    %v79 = vand.u32 %v76, 15
    %v80 = vcvt.s32.f32 %v77
    %v81 = vcvt.s32.f32 %v78
    %v82 = vcvt.s32.f32 %v79
    %v83 = vpack.c.bf16 %v81, %v80
    %v84 = vpack.c.bf16 %v82, %v82
    %v87 = vunpack.c.l.b16 %v83
    %v88 = vunpack.c.h.b16 %v83
    %v89 = vunpack.c.l.b16 %v84
    %v90 = vpack.c.b16 %v87, %v87
    %v91 = vpack.c.b16 %v88, %v88
    %v92 = vpack.c.b16 %v89, %v89
    %96 = vst [vmem:[#allocation2] sm:$0xf] %v90
    %97 = vst [vmem:[#allocation2 + $0x4] sm:$0xf] %v91
    %98 = vst [vmem:[#allocation2 + $0x8] sm:$0xf] %v92
    %v99 = vld [vmem:[#allocation3] sm:$0x1]
    %v100 = vld [vmem:[#allocation2] sm:$0xf]
    %v101 = vld [vmem:[#allocation2 + $0x4] sm:$0xf]
    %v102 = vld [vmem:[#allocation2 + $0x8] sm:$0xf]
    %v104 = vunpack.c.l.b16 %v99
    %v105 = vpack.c.b16 %v104, %v104
    %v107 = vshrl.u32 %v105, 16
    %v112 = vunpack.c.l.b16 %v100
    %v113 = vunpack.c.l.b16 %v101
    %v114 = vunpack.c.l.b16 %v102
    %v115 = vpack.c.b16 %v113, %v112
    %v116 = vpack.c.b16 %v114, %v114
    %vm118 = vcmask 195584
    %v120 = vsel %vm118, %v107, 0
    %vm122 = vcmask 1043456
    %v124 = vsel %vm122, %v116, 0
    %126 = vmatprep.subr.bf16.mxu0 0
    %127 = vmatpush1.bf16.msra.mxu0 %v115
    %128 = vmatprep.subr.bf16.mxu0 0
    %129 = vmatpush1.bf16.msra.mxu0 %v124
    %130 = vmatprep.subr.bf16.mxu0 0
    %131 = vmatpush1.bf16.msra.mxu0 0
    %132 = vmatprep.subr.bf16.mxu0 0
    %133 = vmatpush1.bf16.msra.mxu0 0
    %134 = vmatprep.subr.bf16.mxu0 0
    %135 = vmatpush1.bf16.msra.mxu0 0
    %136 = vmatprep.subr.bf16.mxu0 0
    %137 = vmatpush1.bf16.msra.mxu0 0
    %138 = vmatprep.subr.bf16.mxu0 0
    %139 = vmatpush1.bf16.msra.mxu0 0
    %140 = vmatprep.subr.bf16.mxu0 0
    %141 = vmatpush1.bf16.msra.mxu0 0
    %142 = vmatprep.subr.bf16.mxu0 0
    %143 = vmatpush1.bf16.msra.mxu0 0
    %144 = vmatprep.subr.bf16.mxu0 0
    %145 = vmatpush1.bf16.msra.mxu0 0
    %146 = vmatprep.subr.bf16.mxu0 0
    %147 = vmatpush1.bf16.msra.mxu0 0
    %148 = vmatprep.subr.bf16.mxu0 0
    %149 = vmatpush1.bf16.msra.mxu0 0
    %150 = vmatprep.subr.bf16.mxu0 0
    %151 = vmatpush1.bf16.msra.mxu0 0
    %152 = vmatprep.subr.bf16.mxu0 0
    %153 = vmatpush1.bf16.msra.mxu0 0
    %154 = vmatprep.subr.bf16.mxu0 0
    %155 = vmatpush1.bf16.msra.mxu0 0
    %156 = vmatprep.subr.bf16.mxu0 0
    %157 = vmatpush1.bf16.msra.mxu0 0
    %158 = vmatprep.mubr.bf16.mxu0 0
    %159 = vmatmul.mubr.bf16.gmra.mrb[0].mxu0 %v120
    %v160 = vpop.f32.mrb[0].mxu0
    %v161 = vadd.f32 0.0, %v160
    %v162 = vpop.f32.mrb[0].mxu0
    %v163 = vpop.f32.mrb[0].mxu0
    %v164 = vpop.f32.mrb[0].mxu0
    %165 = vdwg.mxu0
    %v169 = vunpack.c.l.b16 %v68
    %v170 = vunpack.c.l.b16 %v69
    %v171 = vunpack.c.l.b16 %v70
    %v172 = vpack.c.b16 %v170, %v169
    %v173 = vpack.c.b16 %v171, %v171
    %v176 = vsel %vm118, %v67, 0
    %v179 = vsel %vm122, %v173, 0
    %181 = vmatprep.subr.bf16.mxu0 0
    %182 = vmatpush1.bf16.msra.mxu0 %v172
    %183 = vmatprep.subr.bf16.mxu0 0
    %184 = vmatpush1.bf16.msra.mxu0 %v179
    %185 = vmatprep.subr.bf16.mxu0 0
    %186 = vmatpush1.bf16.msra.mxu0 0
    %187 = vmatprep.subr.bf16.mxu0 0
    %188 = vmatpush1.bf16.msra.mxu0 0
    %189 = vmatprep.subr.bf16.mxu0 0
    %190 = vmatpush1.bf16.msra.mxu0 0
    %191 = vmatprep.subr.bf16.mxu0 0
    %192 = vmatpush1.bf16.msra.mxu0 0
    %193 = vmatprep.subr.bf16.mxu0 0
    %194 = vmatpush1.bf16.msra.mxu0 0
    %195 = vmatprep.subr.bf16.mxu0 0
    %196 = vmatpush1.bf16.msra.mxu0 0
    %197 = vmatprep.subr.bf16.mxu0 0
    %198 = vmatpush1.bf16.msra.mxu0 0
    %199 = vmatprep.subr.bf16.mxu0 0
    %200 = vmatpush1.bf16.msra.mxu0 0
    %201 = vmatprep.subr.bf16.mxu0 0
    %202 = vmatpush1.bf16.msra.mxu0 0
    %203 = vmatprep.subr.bf16.mxu0 0
    %204 = vmatpush1.bf16.msra.mxu0 0
    %205 = vmatprep.subr.bf16.mxu0 0
    %206 = vmatpush1.bf16.msra.mxu0 0
    %207 = vmatprep.subr.bf16.mxu0 0
    %208 = vmatpush1.bf16.msra.mxu0 0
    %209 = vmatprep.subr.bf16.mxu0 0
    %210 = vmatpush1.bf16.msra.mxu0 0
    %211 = vmatprep.subr.bf16.mxu0 0
    %212 = vmatpush1.bf16.msra.mxu0 0
    %213 = vmatprep.mubr.bf16.mxu0 0
    %214 = vmatmul.mubr.bf16.gmra.mrb[0].mxu0 %v176
    %v215 = vpop.f32.mrb[0].mxu0
    %v216 = vadd.f32 %v161, %v215
    %v217 = vpop.f32.mrb[0].mxu0
    %v218 = vpop.f32.mrb[0].mxu0
    %v219 = vpop.f32.mrb[0].mxu0
    %220 = vdwg.mxu0
    %v221 = vld [vmem:[#allocation6] sm:$0xff]
    %v222 = vld [vmem:[#allocation6 + $0x8] sm:$0xff]
    %v223 = vld [vmem:[#allocation6 + $0x10] sm:$0xff]
    %v224 = vshra.s32 %v221, 8
    %v225 = vshra.s32 %v222, 8
    %v226 = vshra.s32 %v223, 8
    %v227 = vand.u32 %v224, 15
    %v228 = vand.u32 %v225, 15
    %v229 = vand.u32 %v226, 15
    %v230 = vcvt.s32.f32 %v227
    %v231 = vcvt.s32.f32 %v228
    %v232 = vcvt.s32.f32 %v229
    %v233 = vpack.c.bf16 %v231, %v230
    %v234 = vpack.c.bf16 %v232, %v232
    %v237 = vunpack.c.l.b16 %v233
    %v238 = vunpack.c.h.b16 %v233
    %v239 = vunpack.c.l.b16 %v234
    %v240 = vpack.c.b16 %v237, %v237
    %v241 = vpack.c.b16 %v238, %v238
    %v242 = vpack.c.b16 %v239, %v239
    %246 = vst [vmem:[#allocation2] sm:$0xf] %v240
    %247 = vst [vmem:[#allocation2 + $0x4] sm:$0xf] %v241
    %248 = vst [vmem:[#allocation2 + $0x8] sm:$0xf] %v242
    %v249 = vld [vmem:[#allocation3] sm:$0x2]
    %v250 = vld [vmem:[#allocation2] sm:$0xf]
    %v251 = vld [vmem:[#allocation2 + $0x4] sm:$0xf]
    %v252 = vld [vmem:[#allocation2 + $0x8] sm:$0xf]
    %v254 = vunpack.c.l.b16 %v249
    %v255 = vpack.c.b16 %v254, %v254
    %v256 = vrot.slane %v255, 1
    %v260 = vunpack.c.l.b16 %v250
    %v261 = vunpack.c.l.b16 %v251
    %v262 = vunpack.c.l.b16 %v252
    %v263 = vpack.c.b16 %v261, %v260
    %v264 = vpack.c.b16 %v262, %v262
    %v267 = vsel %vm118, %v256, 0
    %v270 = vsel %vm122, %v264, 0
    %272 = vmatprep.subr.bf16.mxu0 0
    %273 = vmatpush1.bf16.msra.mxu0 %v263
    %274 = vmatprep.subr.bf16.mxu0 0
    %275 = vmatpush1.bf16.msra.mxu0 %v270
    %276 = vmatprep.subr.bf16.mxu0 0
    %277 = vmatpush1.bf16.msra.mxu0 0
    %278 = vmatprep.subr.bf16.mxu0 0
    %279 = vmatpush1.bf16.msra.mxu0 0
    %280 = vmatprep.subr.bf16.mxu0 0
    %281 = vmatpush1.bf16.msra.mxu0 0
    %282 = vmatprep.subr.bf16.mxu0 0
    %283 = vmatpush1.bf16.msra.mxu0 0
    %284 = vmatprep.subr.bf16.mxu0 0
    %285 = vmatpush1.bf16.msra.mxu0 0
    %286 = vmatprep.subr.bf16.mxu0 0
    %287 = vmatpush1.bf16.msra.mxu0 0
    %288 = vmatprep.subr.bf16.mxu0 0
    %289 = vmatpush1.bf16.msra.mxu0 0
    %290 = vmatprep.subr.bf16.mxu0 0
    %291 = vmatpush1.bf16.msra.mxu0 0
    %292 = vmatprep.subr.bf16.mxu0 0
    %293 = vmatpush1.bf16.msra.mxu0 0
    %294 = vmatprep.subr.bf16.mxu0 0
    %295 = vmatpush1.bf16.msra.mxu0 0
    %296 = vmatprep.subr.bf16.mxu0 0
    %297 = vmatpush1.bf16.msra.mxu0 0
    %298 = vmatprep.subr.bf16.mxu0 0
    %299 = vmatpush1.bf16.msra.mxu0 0
    %300 = vmatprep.subr.bf16.mxu0 0
    %301 = vmatpush1.bf16.msra.mxu0 0
    %302 = vmatprep.subr.bf16.mxu0 0
    %303 = vmatpush1.bf16.msra.mxu0 0
    %304 = vmatprep.mubr.bf16.mxu0 0
    %305 = vmatmul.mubr.bf16.gmra.mrb[0].mxu0 %v267
    %v306 = vpop.f32.mrb[0].mxu0
    %v307 = vadd.f32 0.0, %v306
    %v308 = vpop.f32.mrb[0].mxu0
    %v309 = vpop.f32.mrb[0].mxu0
    %v310 = vpop.f32.mrb[0].mxu0
    %311 = vdwg.mxu0
    %v312 = vadd.f32 %v216, %v307
    %v313 = vld [vmem:[#allocation6] sm:$0xff]
    %v314 = vld [vmem:[#allocation6 + $0x8] sm:$0xff]
    %v315 = vld [vmem:[#allocation6 + $0x10] sm:$0xff]
    %v316 = vshra.s32 %v313, 12
    %v317 = vshra.s32 %v314, 12
    %v318 = vshra.s32 %v315, 12
    %v319 = vand.u32 %v316, 15
    %v320 = vand.u32 %v317, 15
    %v321 = vand.u32 %v318, 15
    %v322 = vcvt.s32.f32 %v319
    %v323 = vcvt.s32.f32 %v320
    %v324 = vcvt.s32.f32 %v321
    %v325 = vpack.c.bf16 %v323, %v322
    %v326 = vpack.c.bf16 %v324, %v324
    %v329 = vunpack.c.l.b16 %v325
    %v330 = vunpack.c.h.b16 %v325
    %v331 = vunpack.c.l.b16 %v326
    %v332 = vpack.c.b16 %v329, %v329
    %v333 = vpack.c.b16 %v330, %v330
    %v334 = vpack.c.b16 %v331, %v331
    %338 = vst [vmem:[#allocation2] sm:$0xf] %v332
    %339 = vst [vmem:[#allocation2 + $0x4] sm:$0xf] %v333
    %340 = vst [vmem:[#allocation2 + $0x8] sm:$0xf] %v334
    %v341 = vld [vmem:[#allocation3] sm:$0x2]
    %v342 = vld [vmem:[#allocation2] sm:$0xf]
    %v343 = vld [vmem:[#allocation2 + $0x4] sm:$0xf]
    %v344 = vld [vmem:[#allocation2 + $0x8] sm:$0xf]
    %v346 = vunpack.c.l.b16 %v341
    %v347 = vpack.c.b16 %v346, %v346
    %v349 = vshrl.u32 %v347, 16
    %v351 = vrot.slane %v349, 1
    %v355 = vunpack.c.l.b16 %v342
    %v356 = vunpack.c.l.b16 %v343
    %v357 = vunpack.c.l.b16 %v344
    %v358 = vpack.c.b16 %v356, %v355
    %v359 = vpack.c.b16 %v357, %v357
    %v362 = vsel %vm118, %v351, 0
    %v365 = vsel %vm122, %v359, 0
    %367 = vmatprep.subr.bf16.mxu0 0
    %368 = vmatpush1.bf16.msra.mxu0 %v358
    %369 = vmatprep.subr.bf16.mxu0 0
    %370 = vmatpush1.bf16.msra.mxu0 %v365
    %371 = vmatprep.subr.bf16.mxu0 0
    %372 = vmatpush1.bf16.msra.mxu0 0
    %373 = vmatprep.subr.bf16.mxu0 0
    %374 = vmatpush1.bf16.msra.mxu0 0
    %375 = vmatprep.subr.bf16.mxu0 0
    %376 = vmatpush1.bf16.msra.mxu0 0
    %377 = vmatprep.subr.bf16.mxu0 0
    %378 = vmatpush1.bf16.msra.mxu0 0
    %379 = vmatprep.subr.bf16.mxu0 0
    %380 = vmatpush1.bf16.msra.mxu0 0
    %381 = vmatprep.subr.bf16.mxu0 0
    %382 = vmatpush1.bf16.msra.mxu0 0
    %383 = vmatprep.subr.bf16.mxu0 0
    %384 = vmatpush1.bf16.msra.mxu0 0
    %385 = vmatprep.subr.bf16.mxu0 0
    %386 = vmatpush1.bf16.msra.mxu0 0
    %387 = vmatprep.subr.bf16.mxu0 0
    %388 = vmatpush1.bf16.msra.mxu0 0
    %389 = vmatprep.subr.bf16.mxu0 0
    %390 = vmatpush1.bf16.msra.mxu0 0
    %391 = vmatprep.subr.bf16.mxu0 0
    %392 = vmatpush1.bf16.msra.mxu0 0
    %393 = vmatprep.subr.bf16.mxu0 0
    %394 = vmatpush1.bf16.msra.mxu0 0
    %395 = vmatprep.subr.bf16.mxu0 0
    %396 = vmatpush1.bf16.msra.mxu0 0
    %397 = vmatprep.subr.bf16.mxu0 0
    %398 = vmatpush1.bf16.msra.mxu0 0
    %399 = vmatprep.mubr.bf16.mxu0 0
    %400 = vmatmul.mubr.bf16.gmra.mrb[0].mxu0 %v362
    %v401 = vpop.f32.mrb[0].mxu0
    %v402 = vadd.f32 0.0, %v401
    %v403 = vpop.f32.mrb[0].mxu0
    %v404 = vpop.f32.mrb[0].mxu0
    %v405 = vpop.f32.mrb[0].mxu0
    %406 = vdwg.mxu0
    %v407 = vadd.f32 %v312, %v402
    %v408 = vld [vmem:[#allocation6] sm:$0xff]
    %v409 = vld [vmem:[#allocation6 + $0x8] sm:$0xff]
    %v410 = vld [vmem:[#allocation6 + $0x10] sm:$0xff]
    %v411 = vshra.s32 %v408, 16
    %v412 = vshra.s32 %v409, 16
    %v413 = vshra.s32 %v410, 16
    %v414 = vand.u32 %v411, 15
    %v415 = vand.u32 %v412, 15
    %v416 = vand.u32 %v413, 15
    %v417 = vcvt.s32.f32 %v414
    %v418 = vcvt.s32.f32 %v415
    %v419 = vcvt.s32.f32 %v416
    %v420 = vpack.c.bf16 %v418, %v417
    %v421 = vpack.c.bf16 %v419, %v419
    %v424 = vunpack.c.l.b16 %v420
    %v425 = vunpack.c.h.b16 %v420
    %v426 = vunpack.c.l.b16 %v421
    %v427 = vpack.c.b16 %v424, %v424
    %v428 = vpack.c.b16 %v425, %v425
    %v429 = vpack.c.b16 %v426, %v426
    %433 = vst [vmem:[#allocation2] sm:$0xf] %v427
    %434 = vst [vmem:[#allocation2 + $0x4] sm:$0xf] %v428
    %435 = vst [vmem:[#allocation2 + $0x8] sm:$0xf] %v429
    %v436 = vld [vmem:[#allocation3] sm:$0x4]
    %v437 = vld [vmem:[#allocation2] sm:$0xf]
    %v438 = vld [vmem:[#allocation2 + $0x4] sm:$0xf]
    %v439 = vld [vmem:[#allocation2 + $0x8] sm:$0xf]
    %v441 = vunpack.c.l.b16 %v436
    %v442 = vpack.c.b16 %v441, %v441
    %v443 = vrot.slane %v442, 2
    %v447 = vunpack.c.l.b16 %v437
    %v448 = vunpack.c.l.b16 %v438
    %v449 = vunpack.c.l.b16 %v439
    %v450 = vpack.c.b16 %v448, %v447
    %v451 = vpack.c.b16 %v449, %v449
    %v454 = vsel %vm118, %v443, 0
    %v457 = vsel %vm122, %v451, 0
    %459 = vmatprep.subr.bf16.mxu0 0
    %460 = vmatpush1.bf16.msra.mxu0 %v450
    %461 = vmatprep.subr.bf16.mxu0 0
    %462 = vmatpush1.bf16.msra.mxu0 %v457
    %463 = vmatprep.subr.bf16.mxu0 0
    %464 = vmatpush1.bf16.msra.mxu0 0
    %465 = vmatprep.subr.bf16.mxu0 0
    %466 = vmatpush1.bf16.msra.mxu0 0
    %467 = vmatprep.subr.bf16.mxu0 0
    %468 = vmatpush1.bf16.msra.mxu0 0
    %469 = vmatprep.subr.bf16.mxu0 0
    %470 = vmatpush1.bf16.msra.mxu0 0
    %471 = vmatprep.subr.bf16.mxu0 0
    %472 = vmatpush1.bf16.msra.mxu0 0
    %473 = vmatprep.subr.bf16.mxu0 0
    %474 = vmatpush1.bf16.msra.mxu0 0
    %475 = vmatprep.subr.bf16.mxu0 0
    %476 = vmatpush1.bf16.msra.mxu0 0
    %477 = vmatprep.subr.bf16.mxu0 0
    %478 = vmatpush1.bf16.msra.mxu0 0
    %479 = vmatprep.subr.bf16.mxu0 0
    %480 = vmatpush1.bf16.msra.mxu0 0
    %481 = vmatprep.subr.bf16.mxu0 0
    %482 = vmatpush1.bf16.msra.mxu0 0
    %483 = vmatprep.subr.bf16.mxu0 0
    %484 = vmatpush1.bf16.msra.mxu0 0
    %485 = vmatprep.subr.bf16.mxu0 0
    %486 = vmatpush1.bf16.msra.mxu0 0
    %487 = vmatprep.subr.bf16.mxu0 0
    %488 = vmatpush1.bf16.msra.mxu0 0
    %489 = vmatprep.subr.bf16.mxu0 0
    %490 = vmatpush1.bf16.msra.mxu0 0
    %491 = vmatprep.mubr.bf16.mxu0 0
    %492 = vmatmul.mubr.bf16.gmra.mrb[0].mxu0 %v454
    %v493 = vpop.f32.mrb[0].mxu0
    %v494 = vadd.f32 0.0, %v493
    %v495 = vpop.f32.mrb[0].mxu0
    %v496 = vpop.f32.mrb[0].mxu0
    %v497 = vpop.f32.mrb[0].mxu0
    %498 = vdwg.mxu0
    %v499 = vadd.f32 %v407, %v494
    %v500 = vld [vmem:[#allocation6] sm:$0xff]
    %v501 = vld [vmem:[#allocation6 + $0x8] sm:$0xff]
    %v502 = vld [vmem:[#allocation6 + $0x10] sm:$0xff]
    %v503 = vshra.s32 %v500, 20
    %v504 = vshra.s32 %v501, 20
    %v505 = vshra.s32 %v502, 20
    %v506 = vand.u32 %v503, 15
    %v507 = vand.u32 %v504, 15
    %v508 = vand.u32 %v505, 15
    %v509 = vcvt.s32.f32 %v506
    %v510 = vcvt.s32.f32 %v507
    %v511 = vcvt.s32.f32 %v508
    %v512 = vpack.c.bf16 %v510, %v509
    %v513 = vpack.c.bf16 %v511, %v511
    %v516 = vunpack.c.l.b16 %v512
    %v517 = vunpack.c.h.b16 %v512
    %v518 = vunpack.c.l.b16 %v513
    %v519 = vpack.c.b16 %v516, %v516
    %v520 = vpack.c.b16 %v517, %v517
    %v521 = vpack.c.b16 %v518, %v518
    %525 = vst [vmem:[#allocation2] sm:$0xf] %v519
    %526 = vst [vmem:[#allocation2 + $0x4] sm:$0xf] %v520
    %527 = vst [vmem:[#allocation2 + $0x8] sm:$0xf] %v521
    %v528 = vld [vmem:[#allocation3] sm:$0x4]
    %v529 = vld [vmem:[#allocation2] sm:$0xf]
    %v530 = vld [vmem:[#allocation2 + $0x4] sm:$0xf]
    %v531 = vld [vmem:[#allocation2 + $0x8] sm:$0xf]
    %v533 = vunpack.c.l.b16 %v528
    %v534 = vpack.c.b16 %v533, %v533
    %v536 = vshrl.u32 %v534, 16
    %v538 = vrot.slane %v536, 2
    %v542 = vunpack.c.l.b16 %v529
    %v543 = vunpack.c.l.b16 %v530
    %v544 = vunpack.c.l.b16 %v531
    %v545 = vpack.c.b16 %v543, %v542
    %v546 = vpack.c.b16 %v544, %v544
    %v549 = vsel %vm118, %v538, 0
    %v552 = vsel %vm122, %v546, 0
    %554 = vmatprep.subr.bf16.mxu0 0
    %555 = vmatpush1.bf16.msra.mxu0 %v545
    %556 = vmatprep.subr.bf16.mxu0 0
    %557 = vmatpush1.bf16.msra.mxu0 %v552
    %558 = vmatprep.subr.bf16.mxu0 0
    %559 = vmatpush1.bf16.msra.mxu0 0
    %560 = vmatprep.subr.bf16.mxu0 0
    %561 = vmatpush1.bf16.msra.mxu0 0
    %562 = vmatprep.subr.bf16.mxu0 0
    %563 = vmatpush1.bf16.msra.mxu0 0
    %564 = vmatprep.subr.bf16.mxu0 0
    %565 = vmatpush1.bf16.msra.mxu0 0
    %566 = vmatprep.subr.bf16.mxu0 0
    %567 = vmatpush1.bf16.msra.mxu0 0
    %568 = vmatprep.subr.bf16.mxu0 0
    %569 = vmatpush1.bf16.msra.mxu0 0
    %570 = vmatprep.subr.bf16.mxu0 0
    %571 = vmatpush1.bf16.msra.mxu0 0
    %572 = vmatprep.subr.bf16.mxu0 0
    %573 = vmatpush1.bf16.msra.mxu0 0
    %574 = vmatprep.subr.bf16.mxu0 0
    %575 = vmatpush1.bf16.msra.mxu0 0
    %576 = vmatprep.subr.bf16.mxu0 0
    %577 = vmatpush1.bf16.msra.mxu0 0
    %578 = vmatprep.subr.bf16.mxu0 0
    %579 = vmatpush1.bf16.msra.mxu0 0
    %580 = vmatprep.subr.bf16.mxu0 0
    %581 = vmatpush1.bf16.msra.mxu0 0
    %582 = vmatprep.subr.bf16.mxu0 0
    %583 = vmatpush1.bf16.msra.mxu0 0
    %584 = vmatprep.subr.bf16.mxu0 0
    %585 = vmatpush1.bf16.msra.mxu0 0
    %586 = vmatprep.mubr.bf16.mxu0 0
    %587 = vmatmul.mubr.bf16.gmra.mrb[0].mxu0 %v549
    %v588 = vpop.f32.mrb[0].mxu0
    %v589 = vadd.f32 0.0, %v588
    %v590 = vpop.f32.mrb[0].mxu0
    %v591 = vpop.f32.mrb[0].mxu0
    %v592 = vpop.f32.mrb[0].mxu0
    %593 = vdwg.mxu0
    %v594 = vadd.f32 %v499, %v589
    %v595 = vld [vmem:[#allocation6] sm:$0xff]
    %v596 = vld [vmem:[#allocation6 + $0x8] sm:$0xff]
    %v597 = vld [vmem:[#allocation6 + $0x10] sm:$0xff]
    %v598 = vshra.s32 %v595, 24
    %v599 = vshra.s32 %v596, 24
    %v600 = vshra.s32 %v597, 24
    %v601 = vand.u32 %v598, 15
    %v602 = vand.u32 %v599, 15
    %v603 = vand.u32 %v600, 15
    %v604 = vcvt.s32.f32 %v601
    %v605 = vcvt.s32.f32 %v602
    %v606 = vcvt.s32.f32 %v603
    %v607 = vpack.c.bf16 %v605, %v604
    %v608 = vpack.c.bf16 %v606, %v606
    %v611 = vunpack.c.l.b16 %v607
    %v612 = vunpack.c.h.b16 %v607
    %v613 = vunpack.c.l.b16 %v608
    %v614 = vpack.c.b16 %v611, %v611
    %v615 = vpack.c.b16 %v612, %v612
    %v616 = vpack.c.b16 %v613, %v613
    %620 = vst [vmem:[#allocation2] sm:$0xf] %v614
    %621 = vst [vmem:[#allocation2 + $0x4] sm:$0xf] %v615
    %622 = vst [vmem:[#allocation2 + $0x8] sm:$0xf] %v616
    %v623 = vld [vmem:[#allocation3] sm:$0x8]
    %v624 = vld [vmem:[#allocation2] sm:$0xf]
    %v625 = vld [vmem:[#allocation2 + $0x4] sm:$0xf]
    %v626 = vld [vmem:[#allocation2 + $0x8] sm:$0xf]
    %v628 = vunpack.c.l.b16 %v623
    %v629 = vpack.c.b16 %v628, %v628
    %v630 = vrot.slane %v629, 3
    %v634 = vunpack.c.l.b16 %v624
    %v635 = vunpack.c.l.b16 %v625
    %v636 = vunpack.c.l.b16 %v626
    %v637 = vpack.c.b16 %v635, %v634
    %v638 = vpack.c.b16 %v636, %v636
    %v641 = vsel %vm118, %v630, 0
    %v644 = vsel %vm122, %v638, 0
    %646 = vmatprep.subr.bf16.mxu0 0
    %647 = vmatpush1.bf16.msra.mxu0 %v637
    %648 = vmatprep.subr.bf16.mxu0 0
    %649 = vmatpush1.bf16.msra.mxu0 %v644
    %650 = vmatprep.subr.bf16.mxu0 0
    %651 = vmatpush1.bf16.msra.mxu0 0
    %652 = vmatprep.subr.bf16.mxu0 0
    %653 = vmatpush1.bf16.msra.mxu0 0
    %654 = vmatprep.subr.bf16.mxu0 0
    %655 = vmatpush1.bf16.msra.mxu0 0
    %656 = vmatprep.subr.bf16.mxu0 0
    %657 = vmatpush1.bf16.msra.mxu0 0
    %658 = vmatprep.subr.bf16.mxu0 0
    %659 = vmatpush1.bf16.msra.mxu0 0
    %660 = vmatprep.subr.bf16.mxu0 0
    %661 = vmatpush1.bf16.msra.mxu0 0
    %662 = vmatprep.subr.bf16.mxu0 0
    %663 = vmatpush1.bf16.msra.mxu0 0
    %664 = vmatprep.subr.bf16.mxu0 0
    %665 = vmatpush1.bf16.msra.mxu0 0
    %666 = vmatprep.subr.bf16.mxu0 0
    %667 = vmatpush1.bf16.msra.mxu0 0
    %668 = vmatprep.subr.bf16.mxu0 0
    %669 = vmatpush1.bf16.msra.mxu0 0
    %670 = vmatprep.subr.bf16.mxu0 0
    %671 = vmatpush1.bf16.msra.mxu0 0
    %672 = vmatprep.subr.bf16.mxu0 0
    %673 = vmatpush1.bf16.msra.mxu0 0
    %674 = vmatprep.subr.bf16.mxu0 0
    %675 = vmatpush1.bf16.msra.mxu0 0
    %676 = vmatprep.subr.bf16.mxu0 0
    %677 = vmatpush1.bf16.msra.mxu0 0
    %678 = vmatprep.mubr.bf16.mxu0 0
    %679 = vmatmul.mubr.bf16.gmra.mrb[0].mxu0 %v641
    %v680 = vpop.f32.mrb[0].mxu0
    %v681 = vadd.f32 0.0, %v680
    %v682 = vpop.f32.mrb[0].mxu0
    %v683 = vpop.f32.mrb[0].mxu0
    %v684 = vpop.f32.mrb[0].mxu0
    %685 = vdwg.mxu0
    %v686 = vadd.f32 %v594, %v681
    %v687 = vld [vmem:[#allocation6] sm:$0xff]
    %v688 = vld [vmem:[#allocation6 + $0x8] sm:$0xff]
    %v689 = vld [vmem:[#allocation6 + $0x10] sm:$0xff]
    %v690 = vshra.s32 %v687, 28
    %v691 = vshra.s32 %v688, 28
    %v692 = vshra.s32 %v689, 28
    %v693 = vand.u32 %v690, 15
    %v694 = vand.u32 %v691, 15
    %v695 = vand.u32 %v692, 15
    %v696 = vcvt.s32.f32 %v693
    %v697 = vcvt.s32.f32 %v694
    %v698 = vcvt.s32.f32 %v695
    %v699 = vpack.c.bf16 %v697, %v696
    %v700 = vpack.c.bf16 %v698, %v698
    %v703 = vunpack.c.l.b16 %v699
    %v704 = vunpack.c.h.b16 %v699
    %v705 = vunpack.c.l.b16 %v700
    %v706 = vpack.c.b16 %v703, %v703
    %v707 = vpack.c.b16 %v704, %v704
    %v708 = vpack.c.b16 %v705, %v705
    %712 = vst [vmem:[#allocation2] sm:$0xf] %v706
    %713 = vst [vmem:[#allocation2 + $0x4] sm:$0xf] %v707
    %714 = vst [vmem:[#allocation2 + $0x8] sm:$0xf] %v708
    %v715 = vld [vmem:[#allocation3] sm:$0x8]
    %v716 = vld [vmem:[#allocation2] sm:$0xf]
    %v717 = vld [vmem:[#allocation2 + $0x4] sm:$0xf]
    %v718 = vld [vmem:[#allocation2 + $0x8] sm:$0xf]
    %v720 = vunpack.c.l.b16 %v715
    %v721 = vpack.c.b16 %v720, %v720
    %v723 = vshrl.u32 %v721, 16
    %v725 = vrot.slane %v723, 3
    %v729 = vunpack.c.l.b16 %v716
    %v730 = vunpack.c.l.b16 %v717
    %v731 = vunpack.c.l.b16 %v718
    %v732 = vpack.c.b16 %v730, %v729
    %v733 = vpack.c.b16 %v731, %v731
    %v736 = vsel %vm118, %v725, 0
    %v739 = vsel %vm122, %v733, 0
    %741 = vmatprep.subr.bf16.mxu0 0
    %742 = vmatpush1.bf16.msra.mxu0 %v732
    %743 = vmatprep.subr.bf16.mxu0 0
    %744 = vmatpush1.bf16.msra.mxu0 %v739
    %745 = vmatprep.subr.bf16.mxu0 0
    %746 = vmatpush1.bf16.msra.mxu0 0
    %747 = vmatprep.subr.bf16.mxu0 0
    %748 = vmatpush1.bf16.msra.mxu0 0
    %749 = vmatprep.subr.bf16.mxu0 0
    %750 = vmatpush1.bf16.msra.mxu0 0
    %751 = vmatprep.subr.bf16.mxu0 0
    %752 = vmatpush1.bf16.msra.mxu0 0
    %753 = vmatprep.subr.bf16.mxu0 0
    %754 = vmatpush1.bf16.msra.mxu0 0
    %755 = vmatprep.subr.bf16.mxu0 0
    %756 = vmatpush1.bf16.msra.mxu0 0
    %757 = vmatprep.subr.bf16.mxu0 0
    %758 = vmatpush1.bf16.msra.mxu0 0
    %759 = vmatprep.subr.bf16.mxu0 0
    %760 = vmatpush1.bf16.msra.mxu0 0
    %761 = vmatprep.subr.bf16.mxu0 0
    %762 = vmatpush1.bf16.msra.mxu0 0
    %763 = vmatprep.subr.bf16.mxu0 0
    %764 = vmatpush1.bf16.msra.mxu0 0
    %765 = vmatprep.subr.bf16.mxu0 0
    %766 = vmatpush1.bf16.msra.mxu0 0
    %767 = vmatprep.subr.bf16.mxu0 0
    %768 = vmatpush1.bf16.msra.mxu0 0
    %769 = vmatprep.subr.bf16.mxu0 0
    %770 = vmatpush1.bf16.msra.mxu0 0
    %771 = vmatprep.subr.bf16.mxu0 0
    %772 = vmatpush1.bf16.msra.mxu0 0
    %773 = vmatprep.mubr.bf16.mxu0 0
    %774 = vmatmul.mubr.bf16.gmra.mrb[0].mxu0 %v736
    %v775 = vpop.f32.mrb[0].mxu0
    %v776 = vadd.f32 0.0, %v775
    %v777 = vpop.f32.mrb[0].mxu0
    %v778 = vpop.f32.mrb[0].mxu0
    %v779 = vpop.f32.mrb[0].mxu0
    %780 = vdwg.mxu0
    %v781 = vadd.f32 %v686, %v776
    %v782 = vld [vmem:[%s2] sm:$0x1]
    %v783 = vmul.f32 %v782, %v781
    %v784 = vld [vmem:[%s2 + $0x1] sm:$0x1]
    %v785 = vadd.f32 %v783, %v784
    %786 = vst [vmem:[#allocation8] sm:$0x1] %v785
    // Predicated region
    $region22: #{tpu_custom_call.1} parent=1 // pred_check
      _
    $region23: #{tpu_custom_call.1} parent=1 // pred_check_branch
      %788 = sbr.rel (0) target = $region25
    $region24: #{tpu_custom_call.1} parent=1 // pred_region
      %s790 = ssub.s32 16, 16
      %791 = vsyncadd [#allocation5], %s790
      %s793 = sshll.u32 [#allocation8], 4
      %s794 = int_to_ptr.vmem [resolvable:$true] %s793
      %796 = dma.vmem_to_hbm [thread:$0]  %s794, 16, %s3, [#allocation5]
    $region25: #{tpu_custom_call.1} parent=1 // pred_fallthru
      _
    // Predicated region
    $region26: #{tpu_custom_call.1} parent=1 // pred_check
      _
    $region27: #{tpu_custom_call.1} parent=1 // pred_check_branch
      %798 = sbr.rel (0) target = $region29
    $region28: #{tpu_custom_call.1} parent=1 // pred_region
      %799 = dma.done [#allocation5], 16
    $region29: #{tpu_custom_call.1} parent=1 // pred_fallthru
      _
    %800 = vsyncpa [#allocation4], 1
    %801 = vsyncpa [#allocation7], 1
    %802 = vsyncpa [#allocation5], 1

</llo_original>
